<compile_context>
chip_gen: v7x
topology: tpu7x:2x2x1
jax: 0.10.0
libtpu: 0.0.40
codegen_flags: <defaults>
</compile_context>

<pallas_src>
import jax
import jax.numpy as jnp
from jax.experimental import pallas as pl
from jax.experimental.pallas import tpu as pltpu

SUBLANE = 8
H1_PAD = 512   # 400 padded to a lane multiple (zero columns are inert)
H2_PAD = 384   # 300 padded to a lane multiple


def _round_up(x, m):
    return (x + m - 1) // m * m


def policy_kernel(s_ref, w1_ref, b1_ref, w2_ref, b2_ref, w3_ref, b3_ref, out_ref):
    # bf16 only at the MXU inputs; accumulate + all elementwise math in f32.
    x = s_ref[...].astype(jnp.bfloat16)                                   # (TB, obs_dim)
    h1 = jnp.dot(x, w1_ref[...], preferred_element_type=jnp.float32)      # (TB, 512)  MXU
    h1 = jnp.maximum(h1 + b1_ref[...], 0.0)                               # ReLU (VPU, f32)
    h2 = jnp.dot(h1.astype(jnp.bfloat16), w2_ref[...],
                 preferred_element_type=jnp.float32)                      # (TB, 384)  MXU
    h2 = jnp.maximum(h2 + b2_ref[...], 0.0)                               # ReLU (VPU, f32)
    h3 = jnp.dot(h2.astype(jnp.bfloat16), w3_ref[...],
                 preferred_element_type=jnp.float32)                      # (TB, A)    MXU
    out_ref[...] = jnp.tanh(h3 + b3_ref[...])                             # tanh (EUP, f32)


def _torch_linear_init(key, fan_in, fan_out, fan_in_pad=None, fan_out_pad=None):
    """PyTorch nn.Linear init U(-1/sqrt(fan_in), 1/sqrt(fan_in)); weight transposed to
    (fan_in, fan_out), zero-padded to (fan_in_pad, fan_out_pad), cast to bf16.
    Bias stays f32, zero-padded to (1, fan_out_pad)."""
    fi = fan_in if fan_in_pad is None else fan_in_pad
    fo = fan_out if fan_out_pad is None else fan_out_pad
    kw, kb = jax.random.split(key)
    bound = 1.0 / jnp.sqrt(jnp.float32(fan_in))
    w = jax.random.uniform(kw, (fan_in, fan_out), jnp.float32, -bound, bound)
    b = jax.random.uniform(kb, (1, fan_out), jnp.float32, -bound, bound)
    w_pad = jnp.zeros((fi, fo), jnp.float32).at[:fan_in, :fan_out].set(w)
    b_pad = jnp.zeros((1, fo), jnp.float32).at[:, :fan_out].set(b)
    return w_pad.astype(jnp.bfloat16), b_pad


def init_policy_params(key, obs_dim, action_dim):
    k1, k2, k3 = jax.random.split(key, 3)
    w1, b1 = _torch_linear_init(k1, obs_dim, 400, fan_out_pad=H1_PAD)          # (obs, 512)
    w2, b2 = _torch_linear_init(k2, 400, 300, fan_in_pad=H1_PAD,
                                fan_out_pad=H2_PAD)                            # (512, 384)
    w3, b3 = _torch_linear_init(k3, 300, action_dim, fan_in_pad=H2_PAD)        # (384, A)
    return {"w1": w1, "b1": b1, "w2": w2, "b2": b2, "w3": w3, "b3": b3,
            "obs_dim": obs_dim, "action_dim": action_dim}


def _choose_batch_tile(B, batch_tile):
    """Batch tile: multiple of 8 (or == B when B < 8), >=2 tiles when B is non-trivial
    (v7x megacore), and balanced so edge-block over-compute stays small."""
    batch_tile = max(SUBLANE, _round_up(batch_tile, SUBLANE))
    if B <= SUBLANE:
        return B                                   # block dim == full array dim: allowed
    n_tiles = max(2, pl.cdiv(B, batch_tile))       # >=2 grid steps for both v7x TCs
    return min(batch_tile, _round_up(pl.cdiv(B, n_tiles), SUBLANE))


def policy_forward(s, params, *, batch_tile=1024):
    """s: (B, obs_dim) float32.  Returns (B, action_dim) float32."""
    w1, b1 = params["w1"], params["b1"]
    w2, b2 = params["w2"], params["b2"]
    w3, b3 = params["w3"], params["b3"]
    B, obs_dim = s.shape
    assert obs_dim == w1.shape[0]
    action_dim = w3.shape[1]

    tb = _choose_batch_tile(B, batch_tile)
    grid = (pl.cdiv(B, tb),)                       # partial edge block is masked by Pallas

    flops = 2 * B * (obs_dim * H1_PAD + H1_PAD * H2_PAD + H2_PAD * action_dim)
    bytes_accessed = ((w1.size + w2.size + w3.size) * 2            # bf16 weights
                      + (b1.size + b2.size + b3.size) * 4          # f32 biases
                      + (s.size + B * action_dim) * 4)             # f32 activations
    cost = pl.CostEstimate(flops=flops,
                           transcendentals=B * action_dim,
                           bytes_accessed=bytes_accessed)

    return pl.pallas_call(
        policy_kernel,
        out_shape=jax.ShapeDtypeStruct((B, action_dim), jnp.float32),
        grid_spec=pltpu.PrefetchScalarGridSpec(
            num_scalar_prefetch=0,
            grid=grid,
            in_specs=[
                pl.BlockSpec((tb, obs_dim), lambda i: (i, 0)),      # activations: tiled
                pl.BlockSpec((obs_dim, H1_PAD), lambda i: (0, 0)),  # weights: VMEM-resident
                pl.BlockSpec((1, H1_PAD), lambda i: (0, 0)),
                pl.BlockSpec((H1_PAD, H2_PAD), lambda i: (0, 0)),
                pl.BlockSpec((1, H2_PAD), lambda i: (0, 0)),
                pl.BlockSpec((H2_PAD, action_dim), lambda i: (0, 0)),
                pl.BlockSpec((1, action_dim), lambda i: (0, 0)),
            ],
            out_specs=pl.BlockSpec((tb, action_dim), lambda i: (i, 0)),
        ),
        compiler_params=pltpu.CompilerParams(
            dimension_semantics=("parallel",),
            vmem_limit_bytes=32 * 1024 * 1024),
        cost_estimate=cost,
    )(s, w1, b1, w2, b2, w3, b3)


def policy_reference(s, p):
    """Pure-JAX reference with the same numerics (bf16 MXU inputs, f32 accumulation)."""
    h1 = jnp.maximum(
        jnp.dot(s.astype(jnp.bfloat16), p["w1"],
                preferred_element_type=jnp.float32) + p["b1"], 0.0)
    h2 = jnp.maximum(
        jnp.dot(h1.astype(jnp.bfloat16), p["w2"],
                preferred_element_type=jnp.float32) + p["b2"], 0.0)
    return jnp.tanh(
        jnp.dot(h2.astype(jnp.bfloat16), p["w3"],
                preferred_element_type=jnp.float32) + p["b3"])


if __name__ == "__main__":
    obs_dim, action_dim = 16, 8

    key = jax.random.PRNGKey(0)
    k_params, k_obs1, k_obs2 = jax.random.split(key, 3)
    params = init_policy_params(k_params, obs_dim, action_dim)

    # Small, single-tile case.
    s_small = jax.random.normal(k_obs1, (8, obs_dim), jnp.float32)
    out_small = jax.block_until_ready(policy_forward(s_small, params))
    assert out_small.shape == (8, action_dim)
    assert jnp.allclose(out_small, policy_reference(s_small, params),
                        atol=1e-4, rtol=1e-4), "mismatch vs pure-JAX reference (B=8)"

    # Multi-tile case exercising >=2 grid steps and a masked partial edge block
    # (24 rows -> 2 tiles of 16, no batch over-padding).
    s_multi = jax.random.normal(k_obs2, (24, obs_dim), jnp.float32)
    out_multi = jax.block_until_ready(policy_forward(s_multi, params))
    assert out_multi.shape == (24, action_dim)
    assert jnp.allclose(out_multi, policy_reference(s_multi, params),
                        atol=1e-4, rtol=1e-4), "mismatch vs pure-JAX reference (B=24)"

    print("KERNEL_OK")
</pallas_src>

<mosaic_0001>
module attributes {stable_mosaic.version = 11 : i64} {
  func.func @policy_kernel(%arg0: i32, %arg1: memref<8x16xf32, #tpu.memory_space<vmem>>, %arg2: memref<16x512xbf16, #tpu.memory_space<vmem>>, %arg3: memref<1x512xf32, #tpu.memory_space<vmem>>, %arg4: memref<512x384xbf16, #tpu.memory_space<vmem>>, %arg5: memref<1x384xf32, #tpu.memory_space<vmem>>, %arg6: memref<384x8xbf16, #tpu.memory_space<vmem>>, %arg7: memref<1x8xf32, #tpu.memory_space<vmem>>, %arg8: memref<8x8xf32, #tpu.memory_space<vmem>>) attributes {dimension_semantics = [#tpu.dimension_semantics<parallel>], iteration_bounds = array<i64: 1>, scalar_prefetch = 0 : i64, scratch_operands = 0 : i64, tpu.core_type = #tpu.core_type<tc>, window_params = [{transform_indices = @transform_0, window_bounds = array<i64: 8, 16>}, {pipeline_mode = #tpu.pipeline_mode<synchronous>, transform_indices = @transform_1, window_bounds = array<i64: 16, 512>}, {pipeline_mode = #tpu.pipeline_mode<synchronous>, transform_indices = @transform_2, window_bounds = array<i64: 1, 512>}, {pipeline_mode = #tpu.pipeline_mode<synchronous>, transform_indices = @transform_3, window_bounds = array<i64: 512, 384>}, {pipeline_mode = #tpu.pipeline_mode<synchronous>, transform_indices = @transform_4, window_bounds = array<i64: 1, 384>}, {pipeline_mode = #tpu.pipeline_mode<synchronous>, transform_indices = @transform_5, window_bounds = array<i64: 384, 8>}, {pipeline_mode = #tpu.pipeline_mode<synchronous>, transform_indices = @transform_6, window_bounds = array<i64: 1, 8>}, {transform_indices = @transform_7, window_bounds = array<i64: 8, 8>}]} {
    %c0 = arith.constant 0 : index
    %c0_0 = arith.constant 0 : index
    %0 = vector.load %arg1[%c0, %c0_0] : memref<8x16xf32, #tpu.memory_space<vmem>>, vector<8x16xf32>
    %1 = arith.truncf %0 : vector<8x16xf32> to vector<8x16xbf16>
    %c0_1 = arith.constant 0 : index
    %c0_2 = arith.constant 0 : index
    %2 = vector.load %arg2[%c0_1, %c0_2] : memref<16x512xbf16, #tpu.memory_space<vmem>>, vector<16x512xbf16>
    %cst = arith.constant dense<0.000000e+00> : vector<8x512xf32>
    %3 = tpu.matmul %1, %2, %cst {dimension_numbers = #tpu.dot_dimension_numbers<[1], [0], [0], [1], [0, 0, 1, 1], [], []>} : vector<8x16xbf16>, vector<16x512xbf16>, vector<8x512xf32> -> vector<8x512xf32>
    %c0_3 = arith.constant 0 : index
    %c0_4 = arith.constant 0 : index
    %4 = vector.load %arg3[%c0_3, %c0_4] : memref<1x512xf32, #tpu.memory_space<vmem>>, vector<1x512xf32>
    %5 = vector.broadcast %4 : vector<1x512xf32> to vector<8x512xf32>
    %6 = arith.addf %3, %5 : vector<8x512xf32>
    %cst_5 = arith.constant 0.000000e+00 : f32
    %7 = vector.broadcast %cst_5 : f32 to vector<8x512xf32>
    %8 = arith.maximumf %6, %7 : vector<8x512xf32>
    %9 = arith.truncf %8 : vector<8x512xf32> to vector<8x512xbf16>
    %c0_6 = arith.constant 0 : index
    %c0_7 = arith.constant 0 : index
    %10 = vector.load %arg4[%c0_6, %c0_7] : memref<512x384xbf16, #tpu.memory_space<vmem>>, vector<512x384xbf16>
    %cst_8 = arith.constant dense<0.000000e+00> : vector<8x384xf32>
    %11 = tpu.matmul %9, %10, %cst_8 {dimension_numbers = #tpu.dot_dimension_numbers<[1], [0], [0], [1], [0, 0, 1, 1], [], []>} : vector<8x512xbf16>, vector<512x384xbf16>, vector<8x384xf32> -> vector<8x384xf32>
    %c0_9 = arith.constant 0 : index
    %c0_10 = arith.constant 0 : index
    %12 = vector.load %arg5[%c0_9, %c0_10] : memref<1x384xf32, #tpu.memory_space<vmem>>, vector<1x384xf32>
    %13 = vector.broadcast %12 : vector<1x384xf32> to vector<8x384xf32>
    %14 = arith.addf %11, %13 : vector<8x384xf32>
    %cst_11 = arith.constant 0.000000e+00 : f32
    %15 = vector.broadcast %cst_11 : f32 to vector<8x384xf32>
    %16 = arith.maximumf %14, %15 : vector<8x384xf32>
    %17 = arith.truncf %16 : vector<8x384xf32> to vector<8x384xbf16>
    %c0_12 = arith.constant 0 : index
    %c0_13 = arith.constant 0 : index
    %18 = vector.load %arg6[%c0_12, %c0_13] : memref<384x8xbf16, #tpu.memory_space<vmem>>, vector<384x8xbf16>
    %cst_14 = arith.constant dense<0.000000e+00> : vector<8x8xf32>
    %19 = tpu.matmul %17, %18, %cst_14 {dimension_numbers = #tpu.dot_dimension_numbers<[1], [0], [0], [1], [0, 0, 1, 1], [], []>} : vector<8x384xbf16>, vector<384x8xbf16>, vector<8x8xf32> -> vector<8x8xf32>
    %c0_15 = arith.constant 0 : index
    %c0_16 = arith.constant 0 : index
    %20 = vector.load %arg7[%c0_15, %c0_16] : memref<1x8xf32, #tpu.memory_space<vmem>>, vector<1x8xf32>
    %21 = vector.broadcast %20 : vector<1x8xf32> to vector<8x8xf32>
    %22 = arith.addf %19, %21 : vector<8x8xf32>
    %23 = math.tanh %22 : vector<8x8xf32>
    %c0_17 = arith.constant 0 : index
    %c0_18 = arith.constant 0 : index
    %24 = vector.load %arg8[%c0_17, %c0_18] : memref<8x8xf32, #tpu.memory_space<vmem>>, vector<8x8xf32>
    tpu.vector_store %arg8[%c0_17, %c0_18], %23 {strides = array<i32>} : memref<8x8xf32, #tpu.memory_space<vmem>>, vector<8x8xf32>,
    return
  }
  func.func @transform_0(%arg0: i32) -> (i32, i32) {
    %c0_i32 = arith.constant 0 : i32
    %c0_i32_0 = arith.constant 0 : i32
    return %arg0, %c0_i32 : i32, i32
  }
  func.func @transform_1(%arg0: i32) -> (i32, i32) {
    %c0_i32 = arith.constant 0 : i32
    %c0_i32_0 = arith.constant 0 : i32
    %c0_i32_1 = arith.constant 0 : i32
    return %c0_i32, %c0_i32_0 : i32, i32
  }
  func.func @transform_2(%arg0: i32) -> (i32, i32) {
    %c0_i32 = arith.constant 0 : i32
    %c0_i32_0 = arith.constant 0 : i32
    %c0_i32_1 = arith.constant 0 : i32
    return %c0_i32, %c0_i32_0 : i32, i32
  }
  func.func @transform_3(%arg0: i32) -> (i32, i32) {
    %c0_i32 = arith.constant 0 : i32
    %c0_i32_0 = arith.constant 0 : i32
    %c0_i32_1 = arith.constant 0 : i32
    return %c0_i32, %c0_i32_0 : i32, i32
  }
  func.func @transform_4(%arg0: i32) -> (i32, i32) {
    %c0_i32 = arith.constant 0 : i32
    %c0_i32_0 = arith.constant 0 : i32
    %c0_i32_1 = arith.constant 0 : i32
    return %c0_i32, %c0_i32_0 : i32, i32
  }
  func.func @transform_5(%arg0: i32) -> (i32, i32) {
    %c0_i32 = arith.constant 0 : i32
    %c0_i32_0 = arith.constant 0 : i32
    %c0_i32_1 = arith.constant 0 : i32
    return %c0_i32, %c0_i32_0 : i32, i32
  }
  func.func @transform_6(%arg0: i32) -> (i32, i32) {
    %c0_i32 = arith.constant 0 : i32
    %c0_i32_0 = arith.constant 0 : i32
    %c0_i32_1 = arith.constant 0 : i32
    return %c0_i32, %c0_i32_0 : i32, i32
  }
  func.func @transform_7(%arg0: i32) -> (i32, i32) {
    %c0_i32 = arith.constant 0 : i32
    %c0_i32_0 = arith.constant 0 : i32
    return %arg0, %c0_i32 : i32, i32
  }
}

</mosaic_0001>

<llo_original>
// kernel: tpu_custom_call.1
$region0: #{tpu_custom_call.1}
  #allocation0 [shape = 'u32[]', space=smem, size = 0x4, offset = 0x4, fixed_abs, tag = 'smem constant byte address 0x4 - core index']
  #allocation1 [shape = 'u32[144,128]{1,0:T(1,128)}', space=vmem, size = 0x12000, scoped, tag = 'internal scratch']
  %s0 = inlined_call_operand.vmem [shape: f32[8,16], index: 0, kind: input, shape index: {}]
  %s1 = inlined_call_operand.vmem [shape: bf16[16,512], index: 1, kind: input, shape index: {}]
  %s2 = inlined_call_operand.vmem [shape: f32[1,512], index: 2, kind: input, shape index: {}]
  %s3 = inlined_call_operand.hbm [shape: bf16[512,384], index: 3, kind: input, shape index: {}]
  %s4 = inlined_call_operand.vmem [shape: f32[1,384], index: 4, kind: input, shape index: {}]
  %s5 = inlined_call_operand.vmem [shape: bf16[384,8], index: 5, kind: input, shape index: {}]
  %s6 = inlined_call_operand.vmem [shape: f32[1,8], index: 6, kind: input, shape index: {}]
  %s7 = inlined_call_operand.hbm [shape: f32[8,8], index: 7, kind: output, shape index: {}]
  %s8 = sld [smem:[#allocation0]]
  $region42: #{tpu_custom_call.1} parent=0
    _
  %s10 = ssub.s32 1, %s8
  %s11 = scalar_select 0, %s10, %s8
  $region1: #{tpu_custom_call.1} parent=0
    #allocation2 [shape = 'u8[393216]{0}', space=vmem, size = 0x60000, scoped, tag = 'input window, operand 3, single buffered']
    #allocation3 [shape = 's32[1]{0}', space=sflag, size = 0x4, scoped, tag = 'scoped memory for tpu_custom_call.1']
    #allocation4 [shape = 's32[1]{0}', space=sflag, size = 0x4, scoped, tag = 'scoped memory for tpu_custom_call.1']
    #allocation5 [shape = 'u8[4096]{0}', space=vmem, size = 0x1000, scoped, tag = 'output window, operand 0, single buffered']
    %12 = vsyncpa [#allocation3], 0
    %13 = vsyncpa [#allocation4], 0
    // Predicated region
    $region2: #{tpu_custom_call.1} parent=1 // pred_check
      _
    $region3: #{tpu_custom_call.1} parent=1 // pred_check_branch
      %15 = sbr.rel (0) target = $region5
    $region4: #{tpu_custom_call.1} parent=1 // pred_region
      _
    $region5: #{tpu_custom_call.1} parent=1 // pred_fallthru
      _
    // Predicated region
    $region6: #{tpu_custom_call.1} parent=1 // pred_check
      _
    $region7: #{tpu_custom_call.1} parent=1 // pred_check_branch
      %17 = sbr.rel (0) target = $region9
    $region8: #{tpu_custom_call.1} parent=1 // pred_region
      _
    $region9: #{tpu_custom_call.1} parent=1 // pred_fallthru
      _
    // Predicated region
    $region10: #{tpu_custom_call.1} parent=1 // pred_check
      _
    $region11: #{tpu_custom_call.1} parent=1 // pred_check_branch
      %19 = sbr.rel (0) target = $region13
    $region12: #{tpu_custom_call.1} parent=1 // pred_region
      _
    $region13: #{tpu_custom_call.1} parent=1 // pred_fallthru
      _
    // Predicated region
    $region14: #{tpu_custom_call.1} parent=1 // pred_check
      _
    $region15: #{tpu_custom_call.1} parent=1 // pred_check_branch
      %21 = sbr.rel (0) target = $region17
    $region16: #{tpu_custom_call.1} parent=1 // pred_region
      %s23 = ssub.s32 12288, 12288
      %24 = vsyncadd [#allocation3], %s23
      %s25 = sshll.u32 [#allocation2], 4
      %s26 = int_to_ptr.vmem [resolvable:$true] %s25
      %31 = dma.hbm_to_vmem [thread:$0]  %s3, 12288, %s26, [#allocation3], 192, 192, 12
    $region17: #{tpu_custom_call.1} parent=1 // pred_fallthru
      _
    // Predicated region
    $region18: #{tpu_custom_call.1} parent=1 // pred_check
      _
    $region19: #{tpu_custom_call.1} parent=1 // pred_check_branch
      %33 = sbr.rel (0) target = $region21
    $region20: #{tpu_custom_call.1} parent=1 // pred_region
      _
    $region21: #{tpu_custom_call.1} parent=1 // pred_fallthru
      _
    // Predicated region
    $region22: #{tpu_custom_call.1} parent=1 // pred_check
      _
    $region23: #{tpu_custom_call.1} parent=1 // pred_check_branch
      %35 = sbr.rel (0) target = $region25
    $region24: #{tpu_custom_call.1} parent=1 // pred_region
      _
    $region25: #{tpu_custom_call.1} parent=1 // pred_fallthru
      _
    // Predicated region
    $region26: #{tpu_custom_call.1} parent=1 // pred_check
      _
    $region27: #{tpu_custom_call.1} parent=1 // pred_check_branch
      %37 = sbr.rel (0) target = $region29
    $region28: #{tpu_custom_call.1} parent=1 // pred_region
      _
    $region29: #{tpu_custom_call.1} parent=1 // pred_fallthru
      _
    // Predicated region
    $region30: #{tpu_custom_call.1} parent=1 // pred_check
      _
    $region31: #{tpu_custom_call.1} parent=1 // pred_check_branch
      %39 = sbr.rel (0) target = $region33
    $region32: #{tpu_custom_call.1} parent=1 // pred_region
      %40 = dma.done [#allocation3], 12288
    $region33: #{tpu_custom_call.1} parent=1 // pred_fallthru
      _
    %v42 = vld [vmem:[%s0] sm:$0xff]
    %v43 = vpack.c.bf16 %v42, %v42
    %v44 = vld [vmem:[%s1] sm:$0xff]
    %v45 = vld [vmem:[%s1 + $0x8] sm:$0xff]
    %v46 = vld [vmem:[%s1 + $0x10] sm:$0xff]
    %v47 = vld [vmem:[%s1 + $0x18] sm:$0xff]
    %v48 = vld [vmem:[%s2] sm:$0xf]
    %v50 = vlaneseq
    %v51 = vshrl.u32 %v50, 7
    %v52 = vsub.s32 0, %v51
    %v53 = vrot.slane %v48, %v52
    %v54 = vlaneseq
    %v55 = vshrl.u32 %v54, 7
    %v56 = vsub.s32 1, %v55
    %v57 = vrot.slane %v48, %v56
    %v58 = vlaneseq
    %v59 = vshrl.u32 %v58, 7
    %v60 = vsub.s32 2, %v59
    %v61 = vrot.slane %v48, %v60
    %v62 = vlaneseq
    %v63 = vshrl.u32 %v62, 7
    %v64 = vsub.s32 3, %v63
    %v65 = vrot.slane %v48, %v64
    %v74 = vunpack.c.l.b16 %v44
    %v75 = vunpack.c.h.b16 %v44
    %v76 = vunpack.c.l.b16 %v45
    %v77 = vunpack.c.h.b16 %v45
    %v78 = vunpack.c.l.b16 %v46
    %v79 = vunpack.c.h.b16 %v46
    %v80 = vunpack.c.l.b16 %v47
    %v81 = vunpack.c.h.b16 %v47
    %v82 = vpack.c.b16 %v78, %v74
    %v83 = vpack.c.b16 %v79, %v75
    %v84 = vpack.c.b16 %v80, %v76
    %v85 = vpack.c.b16 %v81, %v77
    %vm90 = vcmask 130048
    %v92 = vsel %vm90, %v43, 0
    %94 = vmatprep.subr.bf16.mxu0 %v83
    %95 = vmatpush1.bf16.msra.mxu0 %v82
    %96 = vmatprep.subr.bf16.mxu0 0
    %97 = vmatpush1.bf16.msra.mxu0 0
    %98 = vmatprep.subr.bf16.mxu0 0
    %99 = vmatpush1.bf16.msra.mxu0 0
    %100 = vmatprep.subr.bf16.mxu0 0
    %101 = vmatpush1.bf16.msra.mxu0 0
    %102 = vmatprep.subr.bf16.mxu0 0
    %103 = vmatpush1.bf16.msra.mxu0 0
    %104 = vmatprep.subr.bf16.mxu0 0
    %105 = vmatpush1.bf16.msra.mxu0 0
    %106 = vmatprep.subr.bf16.mxu0 0
    %107 = vmatpush1.bf16.msra.mxu0 0
    %108 = vmatprep.subr.bf16.mxu0 0
    %109 = vmatpush1.bf16.msra.mxu0 0
    %110 = vmatprep.subr.bf16.mxu0 0
    %111 = vmatpush1.bf16.msra.mxu0 0
    %112 = vmatprep.subr.bf16.mxu0 0
    %113 = vmatpush1.bf16.msra.mxu0 0
    %114 = vmatprep.subr.bf16.mxu0 0
    %115 = vmatpush1.bf16.msra.mxu0 0
    %116 = vmatprep.subr.bf16.mxu0 0
    %117 = vmatpush1.bf16.msra.mxu0 0
    %118 = vmatprep.subr.bf16.mxu0 0
    %119 = vmatpush1.bf16.msra.mxu0 0
    %120 = vmatprep.subr.bf16.mxu0 0
    %121 = vmatpush1.bf16.msra.mxu0 0
    %122 = vmatprep.subr.bf16.mxu0 0
    %123 = vmatpush1.bf16.msra.mxu0 0
    %124 = vmatprep.subr.bf16.mxu0 0
    %125 = vmatpush1.bf16.msra.mxu0 0
    %126 = vmatprep.mubr.bf16.mxu0 0
    %127 = vmatmul.mubr.bf16.gmra.mrb[0].mxu0 %v92
    %v128 = vpop.f32.mrb[0].mxu0
    %v129 = vadd.f32 %v53, %v128
    %v130 = vpop.f32.mrb[0].mxu0
    %v131 = vadd.f32 %v57, %v130
    %v132 = vpop.f32.mrb[0].mxu0
    %v133 = vpop.f32.mrb[0].mxu0
    %134 = vdwg.mxu0
    %135 = vmatprep.subr.bf16.mxu0 %v85
    %136 = vmatpush1.bf16.msra.mxu0 %v84
    %137 = vmatprep.subr.bf16.mxu0 0
    %138 = vmatpush1.bf16.msra.mxu0 0
    %139 = vmatprep.subr.bf16.mxu0 0
    %140 = vmatpush1.bf16.msra.mxu0 0
    %141 = vmatprep.subr.bf16.mxu0 0
    %142 = vmatpush1.bf16.msra.mxu0 0
    %143 = vmatprep.subr.bf16.mxu0 0
    %144 = vmatpush1.bf16.msra.mxu0 0
    %145 = vmatprep.subr.bf16.mxu0 0
    %146 = vmatpush1.bf16.msra.mxu0 0
    %147 = vmatprep.subr.bf16.mxu0 0
    %148 = vmatpush1.bf16.msra.mxu0 0
    %149 = vmatprep.subr.bf16.mxu0 0
    %150 = vmatpush1.bf16.msra.mxu0 0
    %151 = vmatprep.subr.bf16.mxu0 0
    %152 = vmatpush1.bf16.msra.mxu0 0
    %153 = vmatprep.subr.bf16.mxu0 0
    %154 = vmatpush1.bf16.msra.mxu0 0
    %155 = vmatprep.subr.bf16.mxu0 0
    %156 = vmatpush1.bf16.msra.mxu0 0
    %157 = vmatprep.subr.bf16.mxu0 0
    %158 = vmatpush1.bf16.msra.mxu0 0
    %159 = vmatprep.subr.bf16.mxu0 0
    %160 = vmatpush1.bf16.msra.mxu0 0
    %161 = vmatprep.subr.bf16.mxu0 0
    %162 = vmatpush1.bf16.msra.mxu0 0
    %163 = vmatprep.subr.bf16.mxu0 0
    %164 = vmatpush1.bf16.msra.mxu0 0
    %165 = vmatprep.subr.bf16.mxu0 0
    %166 = vmatpush1.bf16.msra.mxu0 0
    %167 = vmatprep.mubr.bf16.mxu0 0
    %168 = vmatmul.mubr.bf16.gmra.mrb[0].mxu0 %v92
    %v169 = vpop.f32.mrb[0].mxu0
    %v170 = vadd.f32 %v61, %v169
    %v171 = vpop.f32.mrb[0].mxu0
    %v172 = vadd.f32 %v65, %v171
    %v173 = vpop.f32.mrb[0].mxu0
    %v174 = vpop.f32.mrb[0].mxu0
    %175 = vdwg.mxu0
    %v176 = vmax.f32 %v129, 0.0
    %v177 = vmax.f32 %v131, 0.0
    %v178 = vmax.f32 %v170, 0.0
    %v179 = vmax.f32 %v172, 0.0
    %v180 = vpack.c.bf16 %v176, %v176
    %v181 = vpack.c.bf16 %v177, %v177
    %v182 = vpack.c.bf16 %v178, %v178
    %v183 = vpack.c.bf16 %v179, %v179
    %v184 = vld [vmem:[#allocation2] sm:$0xff]
    %v185 = vld [vmem:[#allocation2 + $0x8] sm:$0xf]
    %v186 = vld [vmem:[#allocation2 + $0xc] sm:$0xff]
    %v187 = vld [vmem:[#allocation2 + $0x14] sm:$0xf]
    %v188 = vld [vmem:[#allocation2 + $0x18] sm:$0xff]
    %v189 = vld [vmem:[#allocation2 + $0x20] sm:$0xf]
    %v190 = vld [vmem:[#allocation2 + $0x24] sm:$0xff]
    %v191 = vld [vmem:[#allocation2 + $0x2c] sm:$0xf]
    %v192 = vld [vmem:[#allocation2 + $0x30] sm:$0xff]
    %v193 = vld [vmem:[#allocation2 + $0x38] sm:$0xf]
    %v194 = vld [vmem:[#allocation2 + $0x3c] sm:$0xff]
    %v195 = vld [vmem:[#allocation2 + $0x44] sm:$0xf]
    %v196 = vld [vmem:[#allocation2 + $0x48] sm:$0xff]
    %v197 = vld [vmem:[#allocation2 + $0x50] sm:$0xf]
    %v198 = vld [vmem:[#allocation2 + $0x54] sm:$0xff]
    %v199 = vld [vmem:[#allocation2 + $0x5c] sm:$0xf]
    %v200 = vld [vmem:[#allocation2 + $0x60] sm:$0xff]
    %v201 = vld [vmem:[#allocation2 + $0x68] sm:$0xf]
    %v202 = vld [vmem:[#allocation2 + $0x6c] sm:$0xff]
    %v203 = vld [vmem:[#allocation2 + $0x74] sm:$0xf]
    %v204 = vld [vmem:[#allocation2 + $0x78] sm:$0xff]
    %v205 = vld [vmem:[#allocation2 + $0x80] sm:$0xf]
    %v206 = vld [vmem:[#allocation2 + $0x84] sm:$0xff]
    %v207 = vld [vmem:[#allocation2 + $0x8c] sm:$0xf]
    %v208 = vld [vmem:[#allocation2 + $0x90] sm:$0xff]
    %v209 = vld [vmem:[#allocation2 + $0x98] sm:$0xf]
    %v210 = vld [vmem:[#allocation2 + $0x9c] sm:$0xff]
    %v211 = vld [vmem:[#allocation2 + $0xa4] sm:$0xf]
    %v212 = vld [vmem:[#allocation2 + $0xa8] sm:$0xff]
    %v213 = vld [vmem:[#allocation2 + $0xb0] sm:$0xf]
    %v214 = vld [vmem:[#allocation2 + $0xb4] sm:$0xff]
    %v215 = vld [vmem:[#allocation2 + $0xbc] sm:$0xf]
    %v216 = vld [vmem:[#allocation2 + $0xc0] sm:$0xff]
    %v217 = vld [vmem:[#allocation2 + $0xc8] sm:$0xf]
    %v218 = vld [vmem:[#allocation2 + $0xcc] sm:$0xff]
    %v219 = vld [vmem:[#allocation2 + $0xd4] sm:$0xf]
    %v220 = vld [vmem:[#allocation2 + $0xd8] sm:$0xff]
    %v221 = vld [vmem:[#allocation2 + $0xe0] sm:$0xf]
    %v222 = vld [vmem:[#allocation2 + $0xe4] sm:$0xff]
    %v223 = vld [vmem:[#allocation2 + $0xec] sm:$0xf]
    %v224 = vld [vmem:[#allocation2 + $0xf0] sm:$0xff]
    %v225 = vld [vmem:[#allocation2 + $0xf8] sm:$0xf]
    %v226 = vld [vmem:[#allocation2 + $0xfc] sm:$0xff]
    %v227 = vld [vmem:[#allocation2 + $0x104] sm:$0xf]
    %v228 = vld [vmem:[#allocation2 + $0x108] sm:$0xff]
    %v229 = vld [vmem:[#allocation2 + $0x110] sm:$0xf]
    %v230 = vld [vmem:[#allocation2 + $0x114] sm:$0xff]
    %v231 = vld [vmem:[#allocation2 + $0x11c] sm:$0xf]
    %v232 = vld [vmem:[#allocation2 + $0x120] sm:$0xff]
    %v233 = vld [vmem:[#allocation2 + $0x128] sm:$0xf]
    %v234 = vld [vmem:[#allocation2 + $0x12c] sm:$0xff]
    %v235 = vld [vmem:[#allocation2 + $0x134] sm:$0xf]
    %v236 = vld [vmem:[#allocation2 + $0x138] sm:$0xff]
    %v237 = vld [vmem:[#allocation2 + $0x140] sm:$0xf]
    %v238 = vld [vmem:[#allocation2 + $0x144] sm:$0xff]
    %v239 = vld [vmem:[#allocation2 + $0x14c] sm:$0xf]
    %v240 = vld [vmem:[#allocation2 + $0x150] sm:$0xff]
    %v241 = vld [vmem:[#allocation2 + $0x158] sm:$0xf]
    %v242 = vld [vmem:[#allocation2 + $0x15c] sm:$0xff]
    %v243 = vld [vmem:[#allocation2 + $0x164] sm:$0xf]
    %v244 = vld [vmem:[#allocation2 + $0x168] sm:$0xff]
    %v245 = vld [vmem:[#allocation2 + $0x170] sm:$0xf]
    %v246 = vld [vmem:[#allocation2 + $0x174] sm:$0xff]
    %v247 = vld [vmem:[#allocation2 + $0x17c] sm:$0xf]
    %v248 = vld [vmem:[#allocation2 + $0x180] sm:$0xff]
    %v249 = vld [vmem:[#allocation2 + $0x188] sm:$0xf]
    %v250 = vld [vmem:[#allocation2 + $0x18c] sm:$0xff]
    %v251 = vld [vmem:[#allocation2 + $0x194] sm:$0xf]
    %v252 = vld [vmem:[#allocation2 + $0x198] sm:$0xff]
    %v253 = vld [vmem:[#allocation2 + $0x1a0] sm:$0xf]
    %v254 = vld [vmem:[#allocation2 + $0x1a4] sm:$0xff]
    %v255 = vld [vmem:[#allocation2 + $0x1ac] sm:$0xf]
    %v256 = vld [vmem:[#allocation2 + $0x1b0] sm:$0xff]
    %v257 = vld [vmem:[#allocation2 + $0x1b8] sm:$0xf]
    %v258 = vld [vmem:[#allocation2 + $0x1bc] sm:$0xff]
    %v259 = vld [vmem:[#allocation2 + $0x1c4] sm:$0xf]
    %v260 = vld [vmem:[#allocation2 + $0x1c8] sm:$0xff]
    %v261 = vld [vmem:[#allocation2 + $0x1d0] sm:$0xf]
    %v262 = vld [vmem:[#allocation2 + $0x1d4] sm:$0xff]
    %v263 = vld [vmem:[#allocation2 + $0x1dc] sm:$0xf]
    %v264 = vld [vmem:[#allocation2 + $0x1e0] sm:$0xff]
    %v265 = vld [vmem:[#allocation2 + $0x1e8] sm:$0xf]
    %v266 = vld [vmem:[#allocation2 + $0x1ec] sm:$0xff]
    %v267 = vld [vmem:[#allocation2 + $0x1f4] sm:$0xf]
    %v268 = vld [vmem:[#allocation2 + $0x1f8] sm:$0xff]
    %v269 = vld [vmem:[#allocation2 + $0x200] sm:$0xf]
    %v270 = vld [vmem:[#allocation2 + $0x204] sm:$0xff]
    %v271 = vld [vmem:[#allocation2 + $0x20c] sm:$0xf]
    %v272 = vld [vmem:[#allocation2 + $0x210] sm:$0xff]
    %v273 = vld [vmem:[#allocation2 + $0x218] sm:$0xf]
    %v274 = vld [vmem:[#allocation2 + $0x21c] sm:$0xff]
    %v275 = vld [vmem:[#allocation2 + $0x224] sm:$0xf]
    %v276 = vld [vmem:[#allocation2 + $0x228] sm:$0xff]
    %v277 = vld [vmem:[#allocation2 + $0x230] sm:$0xf]
    %v278 = vld [vmem:[#allocation2 + $0x234] sm:$0xff]
    %v279 = vld [vmem:[#allocation2 + $0x23c] sm:$0xf]
    %v280 = vld [vmem:[#allocation2 + $0x240] sm:$0xff]
    %v281 = vld [vmem:[#allocation2 + $0x248] sm:$0xf]
    %v282 = vld [vmem:[#allocation2 + $0x24c] sm:$0xff]
    %v283 = vld [vmem:[#allocation2 + $0x254] sm:$0xf]
    %v284 = vld [vmem:[#allocation2 + $0x258] sm:$0xff]
    %v285 = vld [vmem:[#allocation2 + $0x260] sm:$0xf]
    %v286 = vld [vmem:[#allocation2 + $0x264] sm:$0xff]
    %v287 = vld [vmem:[#allocation2 + $0x26c] sm:$0xf]
    %v288 = vld [vmem:[#allocation2 + $0x270] sm:$0xff]
    %v289 = vld [vmem:[#allocation2 + $0x278] sm:$0xf]
    %v290 = vld [vmem:[#allocation2 + $0x27c] sm:$0xff]
    %v291 = vld [vmem:[#allocation2 + $0x284] sm:$0xf]
    %v292 = vld [vmem:[#allocation2 + $0x288] sm:$0xff]
    %v293 = vld [vmem:[#allocation2 + $0x290] sm:$0xf]
    %v294 = vld [vmem:[#allocation2 + $0x294] sm:$0xff]
    %v295 = vld [vmem:[#allocation2 + $0x29c] sm:$0xf]
    %v296 = vld [vmem:[#allocation2 + $0x2a0] sm:$0xff]
    %v297 = vld [vmem:[#allocation2 + $0x2a8] sm:$0xf]
    %v298 = vld [vmem:[#allocation2 + $0x2ac] sm:$0xff]
    %v299 = vld [vmem:[#allocation2 + $0x2b4] sm:$0xf]
    %v300 = vld [vmem:[#allocation2 + $0x2b8] sm:$0xff]
    %v301 = vld [vmem:[#allocation2 + $0x2c0] sm:$0xf]
    %v302 = vld [vmem:[#allocation2 + $0x2c4] sm:$0xff]
    %v303 = vld [vmem:[#allocation2 + $0x2cc] sm:$0xf]
    %v304 = vld [vmem:[#allocation2 + $0x2d0] sm:$0xff]
    %v305 = vld [vmem:[#allocation2 + $0x2d8] sm:$0xf]
    %v306 = vld [vmem:[#allocation2 + $0x2dc] sm:$0xff]
    %v307 = vld [vmem:[#allocation2 + $0x2e4] sm:$0xf]
    %v308 = vld [vmem:[#allocation2 + $0x2e8] sm:$0xff]
    %v309 = vld [vmem:[#allocation2 + $0x2f0] sm:$0xf]
    %v310 = vld [vmem:[#allocation2 + $0x2f4] sm:$0xff]
    %v311 = vld [vmem:[#allocation2 + $0x2fc] sm:$0xf]
    %v312 = vld [vmem:[%s4] sm:$0x7]
    %v314 = vlaneseq
    %v315 = vshrl.u32 %v314, 7
    %v316 = vsub.s32 0, %v315
    %v317 = vrot.slane %v312, %v316
    %v318 = vlaneseq
    %v319 = vshrl.u32 %v318, 7
    %v320 = vsub.s32 1, %v319
    %v321 = vrot.slane %v312, %v320
    %v322 = vlaneseq
    %v323 = vshrl.u32 %v322, 7
    %v324 = vsub.s32 2, %v323
    %v325 = vrot.slane %v312, %v324
    %v457 = vunpack.c.l.b16 %v184
    %v458 = vunpack.c.h.b16 %v184
    %v459 = vunpack.c.l.b16 %v185
    %v460 = vunpack.c.l.b16 %v186
    %v461 = vunpack.c.h.b16 %v186
    %v462 = vunpack.c.l.b16 %v187
    %v463 = vunpack.c.l.b16 %v188
    %v464 = vunpack.c.h.b16 %v188
    %v465 = vunpack.c.l.b16 %v189
    %v466 = vunpack.c.l.b16 %v190
    %v467 = vunpack.c.h.b16 %v190
    %v468 = vunpack.c.l.b16 %v191
    %v469 = vunpack.c.l.b16 %v192
    %v470 = vunpack.c.h.b16 %v192
    %v471 = vunpack.c.l.b16 %v193
    %v472 = vunpack.c.l.b16 %v194
    %v473 = vunpack.c.h.b16 %v194
    %v474 = vunpack.c.l.b16 %v195
    %v475 = vunpack.c.l.b16 %v196
    %v476 = vunpack.c.h.b16 %v196
    %v477 = vunpack.c.l.b16 %v197
    %v478 = vunpack.c.l.b16 %v198
    %v479 = vunpack.c.h.b16 %v198
    %v480 = vunpack.c.l.b16 %v199
    %v481 = vunpack.c.l.b16 %v200
    %v482 = vunpack.c.h.b16 %v200
    %v483 = vunpack.c.l.b16 %v201
    %v484 = vunpack.c.l.b16 %v202
    %v485 = vunpack.c.h.b16 %v202
    %v486 = vunpack.c.l.b16 %v203
    %v487 = vunpack.c.l.b16 %v204
    %v488 = vunpack.c.h.b16 %v204
    %v489 = vunpack.c.l.b16 %v205
    %v490 = vunpack.c.l.b16 %v206
    %v491 = vunpack.c.h.b16 %v206
    %v492 = vunpack.c.l.b16 %v207
    %v493 = vunpack.c.l.b16 %v208
    %v494 = vunpack.c.h.b16 %v208
    %v495 = vunpack.c.l.b16 %v209
    %v496 = vunpack.c.l.b16 %v210
    %v497 = vunpack.c.h.b16 %v210
    %v498 = vunpack.c.l.b16 %v211
    %v499 = vunpack.c.l.b16 %v212
    %v500 = vunpack.c.h.b16 %v212
    %v501 = vunpack.c.l.b16 %v213
    %v502 = vunpack.c.l.b16 %v214
    %v503 = vunpack.c.h.b16 %v214
    %v504 = vunpack.c.l.b16 %v215
    %v505 = vunpack.c.l.b16 %v216
    %v506 = vunpack.c.h.b16 %v216
    %v507 = vunpack.c.l.b16 %v217
    %v508 = vunpack.c.l.b16 %v218
    %v509 = vunpack.c.h.b16 %v218
    %v510 = vunpack.c.l.b16 %v219
    %v511 = vunpack.c.l.b16 %v220
    %v512 = vunpack.c.h.b16 %v220
    %v513 = vunpack.c.l.b16 %v221
    %v514 = vunpack.c.l.b16 %v222
    %v515 = vunpack.c.h.b16 %v222
    %v516 = vunpack.c.l.b16 %v223
    %v517 = vunpack.c.l.b16 %v224
    %v518 = vunpack.c.h.b16 %v224
    %v519 = vunpack.c.l.b16 %v225
    %v520 = vunpack.c.l.b16 %v226
    %v521 = vunpack.c.h.b16 %v226
    %v522 = vunpack.c.l.b16 %v227
    %v523 = vunpack.c.l.b16 %v228
    %v524 = vunpack.c.h.b16 %v228
    %v525 = vunpack.c.l.b16 %v229
    %v526 = vunpack.c.l.b16 %v230
    %v527 = vunpack.c.h.b16 %v230
    %v528 = vunpack.c.l.b16 %v231
    %v529 = vunpack.c.l.b16 %v232
    %v530 = vunpack.c.h.b16 %v232
    %v531 = vunpack.c.l.b16 %v233
    %v532 = vunpack.c.l.b16 %v234
    %v533 = vunpack.c.h.b16 %v234
    %v534 = vunpack.c.l.b16 %v235
    %v535 = vunpack.c.l.b16 %v236
    %v536 = vunpack.c.h.b16 %v236
    %v537 = vunpack.c.l.b16 %v237
    %v538 = vunpack.c.l.b16 %v238
    %v539 = vunpack.c.h.b16 %v238
    %v540 = vunpack.c.l.b16 %v239
    %v541 = vunpack.c.l.b16 %v240
    %v542 = vunpack.c.h.b16 %v240
    %v543 = vunpack.c.l.b16 %v241
    %v544 = vunpack.c.l.b16 %v242
    %v545 = vunpack.c.h.b16 %v242
    %v546 = vunpack.c.l.b16 %v243
    %v547 = vunpack.c.l.b16 %v244
    %v548 = vunpack.c.h.b16 %v244
    %v549 = vunpack.c.l.b16 %v245
    %v550 = vunpack.c.l.b16 %v246
    %v551 = vunpack.c.h.b16 %v246
    %v552 = vunpack.c.l.b16 %v247
    %v553 = vunpack.c.l.b16 %v248
    %v554 = vunpack.c.h.b16 %v248
    %v555 = vunpack.c.l.b16 %v249
    %v556 = vunpack.c.l.b16 %v250
    %v557 = vunpack.c.h.b16 %v250
    %v558 = vunpack.c.l.b16 %v251
    %v559 = vunpack.c.l.b16 %v252
    %v560 = vunpack.c.h.b16 %v252
    %v561 = vunpack.c.l.b16 %v253
    %v562 = vunpack.c.l.b16 %v254
    %v563 = vunpack.c.h.b16 %v254
    %v564 = vunpack.c.l.b16 %v255
    %v565 = vunpack.c.l.b16 %v256
    %v566 = vunpack.c.h.b16 %v256
    %v567 = vunpack.c.l.b16 %v257
    %v568 = vunpack.c.l.b16 %v258
    %v569 = vunpack.c.h.b16 %v258
    %v570 = vunpack.c.l.b16 %v259
    %v571 = vunpack.c.l.b16 %v260
    %v572 = vunpack.c.h.b16 %v260
    %v573 = vunpack.c.l.b16 %v261
    %v574 = vunpack.c.l.b16 %v262
    %v575 = vunpack.c.h.b16 %v262
    %v576 = vunpack.c.l.b16 %v263
    %v577 = vunpack.c.l.b16 %v264
    %v578 = vunpack.c.h.b16 %v264
    %v579 = vunpack.c.l.b16 %v265
    %v580 = vunpack.c.l.b16 %v266
    %v581 = vunpack.c.h.b16 %v266
    %v582 = vunpack.c.l.b16 %v267
    %v583 = vunpack.c.l.b16 %v268
    %v584 = vunpack.c.h.b16 %v268
    %v585 = vunpack.c.l.b16 %v269
    %v586 = vunpack.c.l.b16 %v270
    %v587 = vunpack.c.h.b16 %v270
    %v588 = vunpack.c.l.b16 %v271
    %v589 = vunpack.c.l.b16 %v272
    %v590 = vunpack.c.h.b16 %v272
    %v591 = vunpack.c.l.b16 %v273
    %v592 = vunpack.c.l.b16 %v274
    %v593 = vunpack.c.h.b16 %v274
    %v594 = vunpack.c.l.b16 %v275
    %v595 = vunpack.c.l.b16 %v276
    %v596 = vunpack.c.h.b16 %v276
    %v597 = vunpack.c.l.b16 %v277
    %v598 = vunpack.c.l.b16 %v278
    %v599 = vunpack.c.h.b16 %v278
    %v600 = vunpack.c.l.b16 %v279
    %v601 = vunpack.c.l.b16 %v280
    %v602 = vunpack.c.h.b16 %v280
    %v603 = vunpack.c.l.b16 %v281
    %v604 = vunpack.c.l.b16 %v282
    %v605 = vunpack.c.h.b16 %v282
    %v606 = vunpack.c.l.b16 %v283
    %v607 = vunpack.c.l.b16 %v284
    %v608 = vunpack.c.h.b16 %v284
    %v609 = vunpack.c.l.b16 %v285
    %v610 = vunpack.c.l.b16 %v286
    %v611 = vunpack.c.h.b16 %v286
    %v612 = vunpack.c.l.b16 %v287
    %v613 = vunpack.c.l.b16 %v288
    %v614 = vunpack.c.h.b16 %v288
    %v615 = vunpack.c.l.b16 %v289
    %v616 = vunpack.c.l.b16 %v290
    %v617 = vunpack.c.h.b16 %v290
    %v618 = vunpack.c.l.b16 %v291
    %v619 = vunpack.c.l.b16 %v292
    %v620 = vunpack.c.h.b16 %v292
    %v621 = vunpack.c.l.b16 %v293
    %v622 = vunpack.c.l.b16 %v294
    %v623 = vunpack.c.h.b16 %v294
    %v624 = vunpack.c.l.b16 %v295
    %v625 = vunpack.c.l.b16 %v296
    %v626 = vunpack.c.h.b16 %v296
    %v627 = vunpack.c.l.b16 %v297
    %v628 = vunpack.c.l.b16 %v298
    %v629 = vunpack.c.h.b16 %v298
    %v630 = vunpack.c.l.b16 %v299
    %v631 = vunpack.c.l.b16 %v300
    %v632 = vunpack.c.h.b16 %v300
    %v633 = vunpack.c.l.b16 %v301
    %v634 = vunpack.c.l.b16 %v302
    %v635 = vunpack.c.h.b16 %v302
    %v636 = vunpack.c.l.b16 %v303
    %v637 = vunpack.c.l.b16 %v304
    %v638 = vunpack.c.h.b16 %v304
    %v639 = vunpack.c.l.b16 %v305
    %v640 = vunpack.c.l.b16 %v306
    %v641 = vunpack.c.h.b16 %v306
    %v642 = vunpack.c.l.b16 %v307
    %v643 = vunpack.c.l.b16 %v308
    %v644 = vunpack.c.h.b16 %v308
    %v645 = vunpack.c.l.b16 %v309
    %v646 = vunpack.c.l.b16 %v310
    %v647 = vunpack.c.h.b16 %v310
    %v648 = vunpack.c.l.b16 %v311
    %v649 = vpack.c.b16 %v460, %v457
    %v650 = vpack.c.b16 %v461, %v458
    %v651 = vpack.c.b16 %v462, %v459
    %v652 = vpack.c.b16 %v466, %v463
    %v653 = vpack.c.b16 %v467, %v464
    %v654 = vpack.c.b16 %v468, %v465
    %v655 = vpack.c.b16 %v472, %v469
    %v656 = vpack.c.b16 %v473, %v470
    %v657 = vpack.c.b16 %v474, %v471
    %v658 = vpack.c.b16 %v478, %v475
    %v659 = vpack.c.b16 %v479, %v476
    %v660 = vpack.c.b16 %v480, %v477
    %v661 = vpack.c.b16 %v484, %v481
    %v662 = vpack.c.b16 %v485, %v482
    %v663 = vpack.c.b16 %v486, %v483
    %v664 = vpack.c.b16 %v490, %v487
    %v665 = vpack.c.b16 %v491, %v488
    %v666 = vpack.c.b16 %v492, %v489
    %v667 = vpack.c.b16 %v496, %v493
    %v668 = vpack.c.b16 %v497, %v494
    %v669 = vpack.c.b16 %v498, %v495
    %v670 = vpack.c.b16 %v502, %v499
    %v671 = vpack.c.b16 %v503, %v500
    %v672 = vpack.c.b16 %v504, %v501
    %v673 = vpack.c.b16 %v508, %v505
    %v674 = vpack.c.b16 %v509, %v506
    %v675 = vpack.c.b16 %v510, %v507
    %v676 = vpack.c.b16 %v514, %v511
    %v677 = vpack.c.b16 %v515, %v512
    %v678 = vpack.c.b16 %v516, %v513
    %v679 = vpack.c.b16 %v520, %v517
    %v680 = vpack.c.b16 %v521, %v518
    %v681 = vpack.c.b16 %v522, %v519
    %v682 = vpack.c.b16 %v526, %v523
    %v683 = vpack.c.b16 %v527, %v524
    %v684 = vpack.c.b16 %v528, %v525
    %v685 = vpack.c.b16 %v532, %v529
    %v686 = vpack.c.b16 %v533, %v530
    %v687 = vpack.c.b16 %v534, %v531
    %v688 = vpack.c.b16 %v538, %v535
    %v689 = vpack.c.b16 %v539, %v536
    %v690 = vpack.c.b16 %v540, %v537
    %v691 = vpack.c.b16 %v544, %v541
    %v692 = vpack.c.b16 %v545, %v542
    %v693 = vpack.c.b16 %v546, %v543
    %v694 = vpack.c.b16 %v550, %v547
    %v695 = vpack.c.b16 %v551, %v548
    %v696 = vpack.c.b16 %v552, %v549
    %v697 = vpack.c.b16 %v556, %v553
    %v698 = vpack.c.b16 %v557, %v554
    %v699 = vpack.c.b16 %v558, %v555
    %v700 = vpack.c.b16 %v562, %v559
    %v701 = vpack.c.b16 %v563, %v560
    %v702 = vpack.c.b16 %v564, %v561
    %v703 = vpack.c.b16 %v568, %v565
    %v704 = vpack.c.b16 %v569, %v566
    %v705 = vpack.c.b16 %v570, %v567
    %v706 = vpack.c.b16 %v574, %v571
    %v707 = vpack.c.b16 %v575, %v572
    %v708 = vpack.c.b16 %v576, %v573
    %v709 = vpack.c.b16 %v580, %v577
    %v710 = vpack.c.b16 %v581, %v578
    %v711 = vpack.c.b16 %v582, %v579
    %v712 = vpack.c.b16 %v586, %v583
    %v713 = vpack.c.b16 %v587, %v584
    %v714 = vpack.c.b16 %v588, %v585
    %v715 = vpack.c.b16 %v592, %v589
    %v716 = vpack.c.b16 %v593, %v590
    %v717 = vpack.c.b16 %v594, %v591
    %v718 = vpack.c.b16 %v598, %v595
    %v719 = vpack.c.b16 %v599, %v596
    %v720 = vpack.c.b16 %v600, %v597
    %v721 = vpack.c.b16 %v604, %v601
    %v722 = vpack.c.b16 %v605, %v602
    %v723 = vpack.c.b16 %v606, %v603
    %v724 = vpack.c.b16 %v610, %v607
    %v725 = vpack.c.b16 %v611, %v608
    %v726 = vpack.c.b16 %v612, %v609
    %v727 = vpack.c.b16 %v616, %v613
    %v728 = vpack.c.b16 %v617, %v614
    %v729 = vpack.c.b16 %v618, %v615
    %v730 = vpack.c.b16 %v622, %v619
    %v731 = vpack.c.b16 %v623, %v620
    %v732 = vpack.c.b16 %v624, %v621
    %v733 = vpack.c.b16 %v628, %v625
    %v734 = vpack.c.b16 %v629, %v626
    %v735 = vpack.c.b16 %v630, %v627
    %v736 = vpack.c.b16 %v634, %v631
    %v737 = vpack.c.b16 %v635, %v632
    %v738 = vpack.c.b16 %v636, %v633
    %v739 = vpack.c.b16 %v640, %v637
    %v740 = vpack.c.b16 %v641, %v638
    %v741 = vpack.c.b16 %v642, %v639
    %v742 = vpack.c.b16 %v646, %v643
    %v743 = vpack.c.b16 %v647, %v644
    %v744 = vpack.c.b16 %v648, %v645
    %841 = vmatprep.subr.bf16.mxu0 %v650
    %842 = vmatpush1.bf16.msra.mxu0 %v649
    %843 = vmatprep.subr.bf16.mxu0 %v653
    %844 = vmatpush1.bf16.msra.mxu0 %v652
    %845 = vmatprep.subr.bf16.mxu0 %v656
    %846 = vmatpush1.bf16.msra.mxu0 %v655
    %847 = vmatprep.subr.bf16.mxu0 %v659
    %848 = vmatpush1.bf16.msra.mxu0 %v658
    %849 = vmatprep.subr.bf16.mxu0 %v662
    %850 = vmatpush1.bf16.msra.mxu0 %v661
    %851 = vmatprep.subr.bf16.mxu0 %v665
    %852 = vmatpush1.bf16.msra.mxu0 %v664
    %853 = vmatprep.subr.bf16.mxu0 %v668
    %854 = vmatpush1.bf16.msra.mxu0 %v667
    %855 = vmatprep.subr.bf16.mxu0 %v671
    %856 = vmatpush1.bf16.msra.mxu0 %v670
    %857 = vmatprep.subr.bf16.mxu0 %v674
    %858 = vmatpush1.bf16.msra.mxu0 %v673
    %859 = vmatprep.subr.bf16.mxu0 %v677
    %860 = vmatpush1.bf16.msra.mxu0 %v676
    %861 = vmatprep.subr.bf16.mxu0 %v680
    %862 = vmatpush1.bf16.msra.mxu0 %v679
    %863 = vmatprep.subr.bf16.mxu0 %v683
    %864 = vmatpush1.bf16.msra.mxu0 %v682
    %865 = vmatprep.subr.bf16.mxu0 %v686
    %866 = vmatpush1.bf16.msra.mxu0 %v685
    %867 = vmatprep.subr.bf16.mxu0 %v689
    %868 = vmatpush1.bf16.msra.mxu0 %v688
    %869 = vmatprep.subr.bf16.mxu0 %v692
    %870 = vmatpush1.bf16.msra.mxu0 %v691
    %871 = vmatprep.subr.bf16.mxu0 %v695
    %872 = vmatpush1.bf16.msra.mxu0 %v694
    %873 = vmatprep.mubr.bf16.mxu0 %v181
    %874 = vmatmul.mubr.bf16.gmra.mrb[0].mxu0 %v180
    %v875 = vpop.f32.mrb[0].mxu0
    %v876 = vadd.f32 %v317, %v875
    %v877 = vpop.f32.mrb[0].mxu0
    %v878 = vadd.f32 %v321, %v877
    %v879 = vpop.f32.mrb[0].mxu0
    %v880 = vpop.f32.mrb[0].mxu0
    %881 = vdwg.mxu0
    %882 = vmatprep.subr.bf16.mxu0 %v698
    %883 = vmatpush1.bf16.msra.mxu0 %v697
    %884 = vmatprep.subr.bf16.mxu0 %v701
    %885 = vmatpush1.bf16.msra.mxu0 %v700
    %886 = vmatprep.subr.bf16.mxu0 %v704
    %887 = vmatpush1.bf16.msra.mxu0 %v703
    %888 = vmatprep.subr.bf16.mxu0 %v707
    %889 = vmatpush1.bf16.msra.mxu0 %v706
    %890 = vmatprep.subr.bf16.mxu0 %v710
    %891 = vmatpush1.bf16.msra.mxu0 %v709
    %892 = vmatprep.subr.bf16.mxu0 %v713
    %893 = vmatpush1.bf16.msra.mxu0 %v712
    %894 = vmatprep.subr.bf16.mxu0 %v716
    %895 = vmatpush1.bf16.msra.mxu0 %v715
    %896 = vmatprep.subr.bf16.mxu0 %v719
    %897 = vmatpush1.bf16.msra.mxu0 %v718
    %898 = vmatprep.subr.bf16.mxu0 %v722
    %899 = vmatpush1.bf16.msra.mxu0 %v721
    %900 = vmatprep.subr.bf16.mxu0 %v725
    %901 = vmatpush1.bf16.msra.mxu0 %v724
    %902 = vmatprep.subr.bf16.mxu0 %v728
    %903 = vmatpush1.bf16.msra.mxu0 %v727
    %904 = vmatprep.subr.bf16.mxu0 %v731
    %905 = vmatpush1.bf16.msra.mxu0 %v730
    %906 = vmatprep.subr.bf16.mxu0 %v734
    %907 = vmatpush1.bf16.msra.mxu0 %v733
    %908 = vmatprep.subr.bf16.mxu0 %v737
    %909 = vmatpush1.bf16.msra.mxu0 %v736
    %910 = vmatprep.subr.bf16.mxu0 %v740
    %911 = vmatpush1.bf16.msra.mxu0 %v739
    %912 = vmatprep.subr.bf16.mxu0 %v743
    %913 = vmatpush1.bf16.msra.mxu0 %v742
    %914 = vmatprep.mubr.bf16.mxu0 %v183
    %915 = vmatmul.mubr.bf16.gmra.mrb[0].mxu0 %v182
    %v916 = vpop.f32.mrb[0].mxu0
    %v917 = vadd.f32 %v876, %v916
    %v918 = vpop.f32.mrb[0].mxu0
    %v919 = vadd.f32 %v878, %v918
    %v920 = vpop.f32.mrb[0].mxu0
    %v921 = vpop.f32.mrb[0].mxu0
    %922 = vdwg.mxu0
    %923 = vmatprep.subr.bf16.mxu0 0
    %924 = vmatpush1.bf16.msra.mxu0 %v651
    %925 = vmatprep.subr.bf16.mxu0 0
    %926 = vmatpush1.bf16.msra.mxu0 %v654
    %927 = vmatprep.subr.bf16.mxu0 0
    %928 = vmatpush1.bf16.msra.mxu0 %v657
    %929 = vmatprep.subr.bf16.mxu0 0
    %930 = vmatpush1.bf16.msra.mxu0 %v660
    %931 = vmatprep.subr.bf16.mxu0 0
    %932 = vmatpush1.bf16.msra.mxu0 %v663
    %933 = vmatprep.subr.bf16.mxu0 0
    %934 = vmatpush1.bf16.msra.mxu0 %v666
    %935 = vmatprep.subr.bf16.mxu0 0
    %936 = vmatpush1.bf16.msra.mxu0 %v669
    %937 = vmatprep.subr.bf16.mxu0 0
    %938 = vmatpush1.bf16.msra.mxu0 %v672
    %939 = vmatprep.subr.bf16.mxu0 0
    %940 = vmatpush1.bf16.msra.mxu0 %v675
    %941 = vmatprep.subr.bf16.mxu0 0
    %942 = vmatpush1.bf16.msra.mxu0 %v678
    %943 = vmatprep.subr.bf16.mxu0 0
    %944 = vmatpush1.bf16.msra.mxu0 %v681
    %945 = vmatprep.subr.bf16.mxu0 0
    %946 = vmatpush1.bf16.msra.mxu0 %v684
    %947 = vmatprep.subr.bf16.mxu0 0
    %948 = vmatpush1.bf16.msra.mxu0 %v687
    %949 = vmatprep.subr.bf16.mxu0 0
    %950 = vmatpush1.bf16.msra.mxu0 %v690
    %951 = vmatprep.subr.bf16.mxu0 0
    %952 = vmatpush1.bf16.msra.mxu0 %v693
    %953 = vmatprep.subr.bf16.mxu0 0
    %954 = vmatpush1.bf16.msra.mxu0 %v696
    %955 = vmatprep.mubr.bf16.mxu0 %v181
    %956 = vmatmul.mubr.bf16.gmra.mrb[0].mxu0 %v180
    %v957 = vpop.f32.mrb[0].mxu0
    %v958 = vadd.f32 %v325, %v957
    %v959 = vpop.f32.mrb[0].mxu0
    %v960 = vpop.f32.mrb[0].mxu0
    %v961 = vpop.f32.mrb[0].mxu0
    %962 = vdwg.mxu0
    %963 = vmatprep.subr.bf16.mxu0 0
    %964 = vmatpush1.bf16.msra.mxu0 %v699
    %965 = vmatprep.subr.bf16.mxu0 0
    %966 = vmatpush1.bf16.msra.mxu0 %v702
    %967 = vmatprep.subr.bf16.mxu0 0
    %968 = vmatpush1.bf16.msra.mxu0 %v705
    %969 = vmatprep.subr.bf16.mxu0 0
    %970 = vmatpush1.bf16.msra.mxu0 %v708
    %971 = vmatprep.subr.bf16.mxu0 0
    %972 = vmatpush1.bf16.msra.mxu0 %v711
    %973 = vmatprep.subr.bf16.mxu0 0
    %974 = vmatpush1.bf16.msra.mxu0 %v714
    %975 = vmatprep.subr.bf16.mxu0 0
    %976 = vmatpush1.bf16.msra.mxu0 %v717
    %977 = vmatprep.subr.bf16.mxu0 0
    %978 = vmatpush1.bf16.msra.mxu0 %v720
    %979 = vmatprep.subr.bf16.mxu0 0
    %980 = vmatpush1.bf16.msra.mxu0 %v723
    %981 = vmatprep.subr.bf16.mxu0 0
    %982 = vmatpush1.bf16.msra.mxu0 %v726
    %983 = vmatprep.subr.bf16.mxu0 0
    %984 = vmatpush1.bf16.msra.mxu0 %v729
    %985 = vmatprep.subr.bf16.mxu0 0
    %986 = vmatpush1.bf16.msra.mxu0 %v732
    %987 = vmatprep.subr.bf16.mxu0 0
    %988 = vmatpush1.bf16.msra.mxu0 %v735
    %989 = vmatprep.subr.bf16.mxu0 0
    %990 = vmatpush1.bf16.msra.mxu0 %v738
    %991 = vmatprep.subr.bf16.mxu0 0
    %992 = vmatpush1.bf16.msra.mxu0 %v741
    %993 = vmatprep.subr.bf16.mxu0 0
    %994 = vmatpush1.bf16.msra.mxu0 %v744
    %995 = vmatprep.mubr.bf16.mxu0 %v183
    %996 = vmatmul.mubr.bf16.gmra.mrb[0].mxu0 %v182
    %v997 = vpop.f32.mrb[0].mxu0
    %v998 = vadd.f32 %v958, %v997
    %v999 = vpop.f32.mrb[0].mxu0
    %v1000 = vpop.f32.mrb[0].mxu0
    %v1001 = vpop.f32.mrb[0].mxu0
    %1002 = vdwg.mxu0
    %v1003 = vmax.f32 %v917, 0.0
    %v1004 = vmax.f32 %v919, 0.0
    %v1005 = vmax.f32 %v998, 0.0
    %v1006 = vpack.c.bf16 %v1003, %v1003
    %v1007 = vpack.c.bf16 %v1004, %v1004
    %v1008 = vpack.c.bf16 %v1005, %v1005
    %v1009 = vld [vmem:[%s5] sm:$0xf]
    %v1010 = vld [vmem:[%s5 + $0x4] sm:$0xf]
    %v1011 = vld [vmem:[%s5 + $0x8] sm:$0xf]
    %v1012 = vld [vmem:[%s5 + $0xc] sm:$0xf]
    %v1013 = vld [vmem:[%s5 + $0x10] sm:$0xf]
    %v1014 = vld [vmem:[%s5 + $0x14] sm:$0xf]
    %v1015 = vld [vmem:[%s5 + $0x18] sm:$0xf]
    %v1016 = vld [vmem:[%s5 + $0x1c] sm:$0xf]
    %v1017 = vld [vmem:[%s5 + $0x20] sm:$0xf]
    %v1018 = vld [vmem:[%s5 + $0x24] sm:$0xf]
    %v1019 = vld [vmem:[%s5 + $0x28] sm:$0xf]
    %v1020 = vld [vmem:[%s5 + $0x2c] sm:$0xf]
    %v1021 = vld [vmem:[%s5 + $0x30] sm:$0xf]
    %v1022 = vld [vmem:[%s5 + $0x34] sm:$0xf]
    %v1023 = vld [vmem:[%s5 + $0x38] sm:$0xf]
    %v1024 = vld [vmem:[%s5 + $0x3c] sm:$0xf]
    %v1025 = vld [vmem:[%s5 + $0x40] sm:$0xf]
    %v1026 = vld [vmem:[%s5 + $0x44] sm:$0xf]
    %v1027 = vld [vmem:[%s5 + $0x48] sm:$0xf]
    %v1028 = vld [vmem:[%s5 + $0x4c] sm:$0xf]
    %v1029 = vld [vmem:[%s5 + $0x50] sm:$0xf]
    %v1030 = vld [vmem:[%s5 + $0x54] sm:$0xf]
    %v1031 = vld [vmem:[%s5 + $0x58] sm:$0xf]
    %v1032 = vld [vmem:[%s5 + $0x5c] sm:$0xf]
    %v1033 = vld [vmem:[%s5 + $0x60] sm:$0xf]
    %v1034 = vld [vmem:[%s5 + $0x64] sm:$0xf]
    %v1035 = vld [vmem:[%s5 + $0x68] sm:$0xf]
    %v1036 = vld [vmem:[%s5 + $0x6c] sm:$0xf]
    %v1037 = vld [vmem:[%s5 + $0x70] sm:$0xf]
    %v1038 = vld [vmem:[%s5 + $0x74] sm:$0xf]
    %v1039 = vld [vmem:[%s5 + $0x78] sm:$0xf]
    %v1040 = vld [vmem:[%s5 + $0x7c] sm:$0xf]
    %v1041 = vld [vmem:[%s5 + $0x80] sm:$0xf]
    %v1042 = vld [vmem:[%s5 + $0x84] sm:$0xf]
    %v1043 = vld [vmem:[%s5 + $0x88] sm:$0xf]
    %v1044 = vld [vmem:[%s5 + $0x8c] sm:$0xf]
    %v1045 = vld [vmem:[%s5 + $0x90] sm:$0xf]
    %v1046 = vld [vmem:[%s5 + $0x94] sm:$0xf]
    %v1047 = vld [vmem:[%s5 + $0x98] sm:$0xf]
    %v1048 = vld [vmem:[%s5 + $0x9c] sm:$0xf]
    %v1049 = vld [vmem:[%s5 + $0xa0] sm:$0xf]
    %v1050 = vld [vmem:[%s5 + $0xa4] sm:$0xf]
    %v1051 = vld [vmem:[%s5 + $0xa8] sm:$0xf]
    %v1052 = vld [vmem:[%s5 + $0xac] sm:$0xf]
    %v1053 = vld [vmem:[%s5 + $0xb0] sm:$0xf]
    %v1054 = vld [vmem:[%s5 + $0xb4] sm:$0xf]
    %v1055 = vld [vmem:[%s5 + $0xb8] sm:$0xf]
    %v1056 = vld [vmem:[%s5 + $0xbc] sm:$0xf]
    %v1057 = vld [vmem:[%s6] sm:$0x1]
    %v1059 = vlaneseq
    %v1060 = vshrl.u32 %v1059, 7
    %v1061 = vsub.s32 0, %v1060
    %v1062 = vrot.slane %v1057, %v1061
    %v1112 = vunpack.c.l.b16 %v1009
    %v1113 = vunpack.c.l.b16 %v1010
    %v1114 = vunpack.c.l.b16 %v1011
    %v1115 = vunpack.c.l.b16 %v1012
    %v1116 = vunpack.c.l.b16 %v1013
    %v1117 = vunpack.c.l.b16 %v1014
    %v1118 = vunpack.c.l.b16 %v1015
    %v1119 = vunpack.c.l.b16 %v1016
    %v1120 = vunpack.c.l.b16 %v1017
    %v1121 = vunpack.c.l.b16 %v1018
    %v1122 = vunpack.c.l.b16 %v1019
    %v1123 = vunpack.c.l.b16 %v1020
    %v1124 = vunpack.c.l.b16 %v1021
    %v1125 = vunpack.c.l.b16 %v1022
    %v1126 = vunpack.c.l.b16 %v1023
    %v1127 = vunpack.c.l.b16 %v1024
    %v1128 = vunpack.c.l.b16 %v1025
    %v1129 = vunpack.c.l.b16 %v1026
    %v1130 = vunpack.c.l.b16 %v1027
    %v1131 = vunpack.c.l.b16 %v1028
    %v1132 = vunpack.c.l.b16 %v1029
    %v1133 = vunpack.c.l.b16 %v1030
    %v1134 = vunpack.c.l.b16 %v1031
    %v1135 = vunpack.c.l.b16 %v1032
    %v1136 = vunpack.c.l.b16 %v1033
    %v1137 = vunpack.c.l.b16 %v1034
    %v1138 = vunpack.c.l.b16 %v1035
    %v1139 = vunpack.c.l.b16 %v1036
    %v1140 = vunpack.c.l.b16 %v1037
    %v1141 = vunpack.c.l.b16 %v1038
    %v1142 = vunpack.c.l.b16 %v1039
    %v1143 = vunpack.c.l.b16 %v1040
    %v1144 = vunpack.c.l.b16 %v1041
    %v1145 = vunpack.c.l.b16 %v1042
    %v1146 = vunpack.c.l.b16 %v1043
    %v1147 = vunpack.c.l.b16 %v1044
    %v1148 = vunpack.c.l.b16 %v1045
    %v1149 = vunpack.c.l.b16 %v1046
    %v1150 = vunpack.c.l.b16 %v1047
    %v1151 = vunpack.c.l.b16 %v1048
    %v1152 = vunpack.c.l.b16 %v1049
    %v1153 = vunpack.c.l.b16 %v1050
    %v1154 = vunpack.c.l.b16 %v1051
    %v1155 = vunpack.c.l.b16 %v1052
    %v1156 = vunpack.c.l.b16 %v1053
    %v1157 = vunpack.c.l.b16 %v1054
    %v1158 = vunpack.c.l.b16 %v1055
    %v1159 = vunpack.c.l.b16 %v1056
    %v1160 = vpack.c.b16 %v1113, %v1112
    %v1161 = vpack.c.b16 %v1115, %v1114
    %v1162 = vpack.c.b16 %v1117, %v1116
    %v1163 = vpack.c.b16 %v1119, %v1118
    %v1164 = vpack.c.b16 %v1121, %v1120
    %v1165 = vpack.c.b16 %v1123, %v1122
    %v1166 = vpack.c.b16 %v1125, %v1124
    %v1167 = vpack.c.b16 %v1127, %v1126
    %v1168 = vpack.c.b16 %v1129, %v1128
    %v1169 = vpack.c.b16 %v1131, %v1130
    %v1170 = vpack.c.b16 %v1133, %v1132
    %v1171 = vpack.c.b16 %v1135, %v1134
    %v1172 = vpack.c.b16 %v1137, %v1136
    %v1173 = vpack.c.b16 %v1139, %v1138
    %v1174 = vpack.c.b16 %v1141, %v1140
    %v1175 = vpack.c.b16 %v1143, %v1142
    %v1176 = vpack.c.b16 %v1145, %v1144
    %v1177 = vpack.c.b16 %v1147, %v1146
    %v1178 = vpack.c.b16 %v1149, %v1148
    %v1179 = vpack.c.b16 %v1151, %v1150
    %v1180 = vpack.c.b16 %v1153, %v1152
    %v1181 = vpack.c.b16 %v1155, %v1154
    %v1182 = vpack.c.b16 %v1157, %v1156
    %v1183 = vpack.c.b16 %v1159, %v1158
    %1208 = vmatprep.subr.bf16.mxu0 0
    %1209 = vmatpush1.bf16.msra.mxu0 %v1160
    %1210 = vmatprep.subr.bf16.mxu0 0
    %1211 = vmatpush1.bf16.msra.mxu0 %v1161
    %1212 = vmatprep.subr.bf16.mxu0 0
    %1213 = vmatpush1.bf16.msra.mxu0 %v1162
    %1214 = vmatprep.subr.bf16.mxu0 0
    %1215 = vmatpush1.bf16.msra.mxu0 %v1163
    %1216 = vmatprep.subr.bf16.mxu0 0
    %1217 = vmatpush1.bf16.msra.mxu0 %v1164
    %1218 = vmatprep.subr.bf16.mxu0 0
    %1219 = vmatpush1.bf16.msra.mxu0 %v1165
    %1220 = vmatprep.subr.bf16.mxu0 0
    %1221 = vmatpush1.bf16.msra.mxu0 %v1166
    %1222 = vmatprep.subr.bf16.mxu0 0
    %1223 = vmatpush1.bf16.msra.mxu0 %v1167
    %1224 = vmatprep.subr.bf16.mxu0 0
    %1225 = vmatpush1.bf16.msra.mxu0 %v1168
    %1226 = vmatprep.subr.bf16.mxu0 0
    %1227 = vmatpush1.bf16.msra.mxu0 %v1169
    %1228 = vmatprep.subr.bf16.mxu0 0
    %1229 = vmatpush1.bf16.msra.mxu0 %v1170
    %1230 = vmatprep.subr.bf16.mxu0 0
    %1231 = vmatpush1.bf16.msra.mxu0 %v1171
    %1232 = vmatprep.subr.bf16.mxu0 0
    %1233 = vmatpush1.bf16.msra.mxu0 %v1172
    %1234 = vmatprep.subr.bf16.mxu0 0
    %1235 = vmatpush1.bf16.msra.mxu0 %v1173
    %1236 = vmatprep.subr.bf16.mxu0 0
    %1237 = vmatpush1.bf16.msra.mxu0 %v1174
    %1238 = vmatprep.subr.bf16.mxu0 0
    %1239 = vmatpush1.bf16.msra.mxu0 %v1175
    %1240 = vmatprep.mubr.bf16.mxu0 %v1007
    %1241 = vmatmul.mubr.bf16.gmra.mrb[0].mxu0 %v1006
    %v1242 = vpop.f32.mrb[0].mxu0
    %v1243 = vadd.f32 %v1062, %v1242
    %v1244 = vpop.f32.mrb[0].mxu0
    %v1245 = vpop.f32.mrb[0].mxu0
    %v1246 = vpop.f32.mrb[0].mxu0
    %1247 = vdwg.mxu0
    %1248 = vmatprep.subr.bf16.mxu0 0
    %1249 = vmatpush1.bf16.msra.mxu0 %v1176
    %1250 = vmatprep.subr.bf16.mxu0 0
    %1251 = vmatpush1.bf16.msra.mxu0 %v1177
    %1252 = vmatprep.subr.bf16.mxu0 0
    %1253 = vmatpush1.bf16.msra.mxu0 %v1178
    %1254 = vmatprep.subr.bf16.mxu0 0
    %1255 = vmatpush1.bf16.msra.mxu0 %v1179
    %1256 = vmatprep.subr.bf16.mxu0 0
    %1257 = vmatpush1.bf16.msra.mxu0 %v1180
    %1258 = vmatprep.subr.bf16.mxu0 0
    %1259 = vmatpush1.bf16.msra.mxu0 %v1181
    %1260 = vmatprep.subr.bf16.mxu0 0
    %1261 = vmatpush1.bf16.msra.mxu0 %v1182
    %1262 = vmatprep.subr.bf16.mxu0 0
    %1263 = vmatpush1.bf16.msra.mxu0 %v1183
    %1264 = vmatprep.subr.bf16.mxu0 0
    %1265 = vmatpush1.bf16.msra.mxu0 0
    %1266 = vmatprep.subr.bf16.mxu0 0
    %1267 = vmatpush1.bf16.msra.mxu0 0
    %1268 = vmatprep.subr.bf16.mxu0 0
    %1269 = vmatpush1.bf16.msra.mxu0 0
    %1270 = vmatprep.subr.bf16.mxu0 0
    %1271 = vmatpush1.bf16.msra.mxu0 0
    %1272 = vmatprep.subr.bf16.mxu0 0
    %1273 = vmatpush1.bf16.msra.mxu0 0
    %1274 = vmatprep.subr.bf16.mxu0 0
    %1275 = vmatpush1.bf16.msra.mxu0 0
    %1276 = vmatprep.subr.bf16.mxu0 0
    %1277 = vmatpush1.bf16.msra.mxu0 0
    %1278 = vmatprep.subr.bf16.mxu0 0
    %1279 = vmatpush1.bf16.msra.mxu0 0
    %1280 = vmatprep.mubr.bf16.mxu0 0
    %1281 = vmatmul.mubr.bf16.gmra.mrb[0].mxu0 %v1008
    %v1282 = vpop.f32.mrb[0].mxu0
    %v1283 = vadd.f32 %v1243, %v1282
    %v1284 = vpop.f32.mrb[0].mxu0
    %v1285 = vpop.f32.mrb[0].mxu0
    %v1286 = vpop.f32.mrb[0].mxu0
    %1287 = vdwg.mxu0
    %v1288 = vtanh.pop %v1283
    %vm1289 = vcmask 64512
    %1290 = vst.msk [vmem:[#allocation5] sm:$0xff] %vm1289, %v1288
    // Predicated region
    $region34: #{tpu_custom_call.1} parent=1 // pred_check
      _
    $region35: #{tpu_custom_call.1} parent=1 // pred_check_branch
      %1292 = sbr.rel (0) target = $region37
    $region36: #{tpu_custom_call.1} parent=1 // pred_region
      %s1294 = ssub.s32 128, 128
      %1295 = vsyncadd [#allocation4], %s1294
      %s1297 = sshll.u32 [#allocation5], 4
      %s1298 = int_to_ptr.vmem [resolvable:$true] %s1297
      %1300 = dma.vmem_to_hbm [thread:$0]  %s1298, 128, %s7, [#allocation4]
    $region37: #{tpu_custom_call.1} parent=1 // pred_fallthru
      _
    // Predicated region
    $region38: #{tpu_custom_call.1} parent=1 // pred_check
      _
    $region39: #{tpu_custom_call.1} parent=1 // pred_check_branch
      %1302 = sbr.rel (0) target = $region41
    $region40: #{tpu_custom_call.1} parent=1 // pred_region
      %1303 = dma.done [#allocation4], 128
    $region41: #{tpu_custom_call.1} parent=1 // pred_fallthru
      _
    %1304 = vsyncpa [#allocation3], 1
    %1305 = vsyncpa [#allocation4], 1

</llo_original>
